<compile_context>
chip_gen: v6e
topology: v6e:2x2x1
jax: 0.10.0
libtpu: 0.0.40
codegen_flags: <defaults>
</compile_context>

<pallas_src>
import math

import jax
import jax.numpy as jnp
from jax.experimental import pallas as pl
from jax.experimental.pallas import tpu as pltpu
from jax.scipy.special import erf


# ---------------------------------------------------------------------------
# small helpers
# ---------------------------------------------------------------------------
def _round_up(x, m):
    return ((x + m - 1) // m) * m


def _gelu_tanh(v):
    # tanh-form GELU: jnp.tanh routes to the EUP (idle slot alongside MXU/VPU).
    c = jnp.float32(0.7978845608028654)        # sqrt(2/pi)
    return 0.5 * v * (1.0 + jnp.tanh(c * (v + jnp.float32(0.044715) * v * v * v)))


def _gelu_exact(v):
    # torch.nn.functional.gelu default (erf) semantics — reference only (XLA).
    return 0.5 * v * (1.0 + erf(v * (1.0 / math.sqrt(2.0))))


def _choose_tile(L, P, want):
    """L tile: multiple of 8, >= P (so the carried halo fits inside one tile)."""
    t = min(_round_up(max(want, 8), 8), _round_up(L, 8))
    t = max(t, _round_up(max(P, 8), 8))
    return t


# ---------------------------------------------------------------------------
# Fused CausalConvolutionBlock kernel
# ---------------------------------------------------------------------------
def _make_kernel(TL, P, HP, k, d, cin_p, cout_p, has_res_conv, final_relu):
    # xbuf / zbuf row layout: rows [HP-P, HP) = carried causal halo,
    # rows [HP, HP+TL) = current tile body (HP multiple of 8 -> aligned body).
    off0 = HP - P

    def kernel(*refs):
        if has_res_conv:
            (x_ref, w1_ref, b1_ref, w2_ref, b2_ref, wr_ref, br_ref,
             o_ref, xbuf, zbuf) = refs
        else:
            (x_ref, w1_ref, b1_ref, w2_ref, b2_ref,
             o_ref, xbuf, zbuf) = refs
            wr_ref = br_ref = None

        l = pl.program_id(1)

        # ---- causal zero padding at the start of every sequence ------------
        if P > 0:
            @pl.when(l == 0)
            def _zero_halo():
                xbuf[off0:HP, :] = jnp.zeros((P, cin_p), jnp.bfloat16)
                zbuf[off0:HP, :] = jnp.zeros((P, cout_p), jnp.bfloat16)

        # Stage the current bf16 x tile next to the carried halo; it is the
        # conv1 slab source, the identity-residual source and next tile's halo.
        xbuf[HP:HP + TL, :] = x_ref[0]

        # ---- conv1 (dilated, causal) + bias + GELU: single store to zbuf ---
        acc = jnp.dot(xbuf[off0:off0 + TL, :], w1_ref[0],
                      preferred_element_type=jnp.float32)
        for tau in range(1, k):                          # statically unrolled
            o = off0 + tau * d
            acc = acc + jnp.dot(xbuf[o:o + TL, :], w1_ref[tau],
                                preferred_element_type=jnp.float32)
        zbuf[HP:HP + TL, :] = _gelu_tanh(acc + b1_ref[...]).astype(jnp.bfloat16)

        # ---- conv2 (dilated, causal) + bias + GELU --------------------------
        acc2 = jnp.dot(zbuf[off0:off0 + TL, :], w2_ref[0],
                       preferred_element_type=jnp.float32)
        for tau in range(1, k):
            o = off0 + tau * d
            acc2 = acc2 + jnp.dot(zbuf[o:o + TL, :], w2_ref[tau],
                                  preferred_element_type=jnp.float32)
        h = _gelu_tanh(acc2 + b2_ref[...])

        # ---- residual (+ optional final ReLU): single output store ----------
        x_cur = xbuf[HP:HP + TL, :]
        if has_res_conv:
            res = jnp.dot(x_cur, wr_ref[...],
                          preferred_element_type=jnp.float32) + br_ref[...]
        else:
            res = x_cur.astype(jnp.float32)
        y = h + res
        if final_relu:
            y = jnp.maximum(y, 0.0)
        o_ref[0] = y.astype(o_ref.dtype)

        # ---- carry halos (last P rows of x and gelu(conv1)) to next L tile --
        if P > 0:
            xbuf[off0:HP, :] = xbuf[HP + TL - P:HP + TL, :]
            zbuf[off0:HP, :] = zbuf[HP + TL - P:HP + TL, :]

    return kernel


def causal_convolution_block_forward(x_ncl, packed, *, kernel_size, dilation,
                                     out_channels, final=False, tile_l=1024):
    """x_ncl: (B, C_in, L) like the PyTorch module.  Returns (B, C_out, L)."""
    B, Cin, L = x_ncl.shape
    cin_p = packed["w1"].shape[1]
    cout_p = packed["w1"].shape[2]
    has_res_conv = "wr" in packed
    P = (kernel_size - 1) * dilation
    HP = _round_up(P, 8) if P > 0 else 0

    TL = _choose_tile(L, P, tile_l)
    Lp = _round_up(L, TL)
    nL = Lp // TL

    # channels-last, zero-pad channels (lane-dense out) + L (tile multiple),
    # cast the MXU operand to bf16 (halves HBM reads; accumulation stays f32).
    x = jnp.transpose(x_ncl, (0, 2, 1))
    x = jnp.pad(x, ((0, 0), (0, Lp - L), (0, cin_p - Cin))).astype(jnp.bfloat16)

    kernel = _make_kernel(TL, P, HP, kernel_size, dilation, cin_p, cout_p,
                          has_res_conv, final)

    in_specs = [
        pl.BlockSpec((1, TL, cin_p), lambda b, l: (b, l, 0)),
        pl.BlockSpec((kernel_size, cin_p, cout_p), lambda b, l: (0, 0, 0)),
        pl.BlockSpec((1, cout_p), lambda b, l: (0, 0)),
        pl.BlockSpec((kernel_size, cout_p, cout_p), lambda b, l: (0, 0, 0)),
        pl.BlockSpec((1, cout_p), lambda b, l: (0, 0)),
    ]
    args = [x, packed["w1"], packed["b1"], packed["w2"], packed["b2"]]
    if has_res_conv:
        in_specs += [pl.BlockSpec((cin_p, cout_p), lambda b, l: (0, 0)),
                     pl.BlockSpec((1, cout_p), lambda b, l: (0, 0))]
        args += [packed["wr"], packed["br"]]

    # Per-step VMEM footprint: double-buffered IO + (invariant) weights +
    # carried scratch.  Clamp so the request stays portable to v7x (64 MiB).
    est = (2 * kernel_size * (cin_p + cout_p) * cout_p * 2       # w1 + w2 (x2 buf)
           + 2 * TL * cin_p * 2                                  # x tile (bf16)
           + 2 * TL * cout_p * 4                                 # out tile (f32)
           + (HP + TL) * (cin_p + cout_p) * 2                    # carried scratch
           + 4 * cout_p * 4)                                     # biases
    if has_res_conv:
        est += 2 * cin_p * cout_p * 2
    vmem_limit = int(min(max(2 * est, 32 * 1024 * 1024), 100 * 1024 * 1024))

    out = pl.pallas_call(
        kernel,
        out_shape=jax.ShapeDtypeStruct((B, Lp, cout_p), jnp.float32),
        grid=(B, nL),
        in_specs=in_specs,
        out_specs=pl.BlockSpec((1, TL, cout_p), lambda b, l: (b, l, 0)),
        scratch_shapes=[
            pltpu.VMEM((HP + TL, cin_p), jnp.bfloat16),   # x body + carried halo
            pltpu.VMEM((HP + TL, cout_p), jnp.bfloat16),  # gelu(conv1) + halo
        ],
        compiler_params=pltpu.CompilerParams(
            # L tiles carry state (halos) -> sequential; batch is the
            # megacore-parallel axis (note: B==1 leaves one v7x core idle).
            dimension_semantics=("parallel", "arbitrary"),
            vmem_limit_bytes=vmem_limit),
    )(*args)

    y = out[:, :L, :out_channels]
    return jnp.transpose(y, (0, 2, 1))


# ---------------------------------------------------------------------------
# Parameter setup / packing (hoisted, done once)
# ---------------------------------------------------------------------------
def init_params(key, in_channels, out_channels, kernel_size):
    """Torch-layout params: weight_norm (v, g) for conv1/conv2 + biases."""
    ks = jax.random.split(key, 8)

    def nrm(k_, shape, scale=0.3):
        return scale * jax.random.normal(k_, shape, jnp.float32)

    p = {
        "v1": nrm(ks[0], (out_channels, in_channels, kernel_size)),
        "g1": 0.5 + jax.random.uniform(ks[1], (out_channels, 1, 1), jnp.float32),
        "b1": nrm(ks[2], (out_channels,), 0.1),
        "v2": nrm(ks[3], (out_channels, out_channels, kernel_size)),
        "g2": 0.5 + jax.random.uniform(ks[4], (out_channels, 1, 1), jnp.float32),
        "b2": nrm(ks[5], (out_channels,), 0.1),
    }
    if in_channels != out_channels:                 # upordownsample 1x1 conv
        p["wr"] = nrm(ks[6], (out_channels, in_channels, 1))
        p["br"] = nrm(ks[7], (out_channels,), 0.1)
    return p


def prepare_packed_params(params, in_channels, out_channels):
    """weight_norm reparam + tap-major channels-last layout + lane pad + bf16.

    Done ONCE at parameter setup (hoisted out of the forward pass).
    """
    has_res_conv = "wr" in params
    cout_p = _round_up(out_channels, 128)                      # lane-dense out
    cin_p = cout_p if not has_res_conv else max(8, _round_up(in_channels, 8))

    def weight_norm(v, g):                                     # norm over (Cin,k)
        n = jnp.sqrt(jnp.sum(v * v, axis=(1, 2), keepdims=True))
        return g * v / n

    def pack_conv(w, ci_p, co_p):                              # (Co,Ci,k)->(k,ci_p,co_p)
        co, ci, _ = w.shape
        wt = jnp.transpose(w, (2, 1, 0))
        wt = jnp.pad(wt, ((0, 0), (0, ci_p - ci), (0, co_p - co)))
        return wt.astype(jnp.bfloat16)

    def pack_bias(b, co_p):
        return jnp.pad(b, (0, co_p - b.shape[0])).reshape(1, co_p).astype(jnp.float32)

    packed = {
        "w1": pack_conv(weight_norm(params["v1"], params["g1"]), cin_p, cout_p),
        "b1": pack_bias(params["b1"], cout_p),
        "w2": pack_conv(weight_norm(params["v2"], params["g2"]), cout_p, cout_p),
        "b2": pack_bias(params["b2"], cout_p),
    }
    if has_res_conv:
        wr = jnp.transpose(params["wr"][:, :, 0], (1, 0))      # (Cin, Cout)
        packed["wr"] = jnp.pad(wr, ((0, cin_p - in_channels),
                                    (0, cout_p - out_channels))).astype(jnp.bfloat16)
        packed["br"] = pack_bias(params["br"], cout_p)
    return packed


# ---------------------------------------------------------------------------
# Pure-JAX f32 reference (exact erf GELU = torch default) for validation.
# ---------------------------------------------------------------------------
def reference_forward(x_ncl, params, kernel_size, dilation, final):
    x = jnp.transpose(x_ncl, (0, 2, 1)).astype(jnp.float32)
    k, d = kernel_size, dilation
    P = (k - 1) * d

    def weight_norm(v, g):
        n = jnp.sqrt(jnp.sum(v * v, axis=(1, 2), keepdims=True))
        return g * v / n

    w1 = weight_norm(params["v1"], params["g1"])
    w2 = weight_norm(params["v2"], params["g2"])

    def causal_conv(z, w, b):
        B, L, _ = z.shape
        zp = jnp.pad(z, ((0, 0), (P, 0), (0, 0)))
        out = jnp.zeros((B, L, w.shape[0]), jnp.float32) + b
        for tau in range(k):
            out = out + zp[:, tau * d: tau * d + L, :] @ w[:, :, tau].T
        return out

    h = _gelu_exact(causal_conv(x, w1, params["b1"]))
    h = _gelu_exact(causal_conv(h, w2, params["b2"]))
    res = x @ params["wr"][:, :, 0].T + params["br"] if "wr" in params else x
    y = h + res
    if final:
        y = jnp.maximum(y, 0.0)
    return jnp.transpose(y, (0, 2, 1))


# ---------------------------------------------------------------------------
if __name__ == "__main__":
    key = jax.random.PRNGKey(0)
    k_x1, k_p1, k_x2, k_p2 = jax.random.split(key, 4)

    # Config 1: in != out channels (1x1 residual conv), no final ReLU.
    B, C_in, L = 2, 4, 16
    C_out, ksz, dil = 32, 3, 2
    x1 = jax.random.normal(k_x1, (B, C_in, L), jnp.float32)
    params1 = init_params(k_p1, C_in, C_out, ksz)
    packed1 = prepare_packed_params(params1, C_in, C_out)      # hoisted, once
    # tile_l=8 -> grid=(B, 2): exercises L tiling + the carried-halo path.
    y1 = causal_convolution_block_forward(
        x1, packed1, kernel_size=ksz, dilation=dil,
        out_channels=C_out, final=False, tile_l=8)
    jax.block_until_ready(y1)
    assert y1.shape == (B, C_out, L)
    ref1 = reference_forward(x1, params1, ksz, dil, final=False)
    err1 = float(jnp.max(jnp.abs(y1 - ref1)))
    # bf16 MXU operands + tanh GELU vs. f32/erf reference -> loose tolerance.
    assert jnp.allclose(y1, ref1, atol=5e-2, rtol=5e-2), err1

    # Config 2: in == out channels (identity residual), final ReLU.
    x2 = jax.random.normal(k_x2, (B, C_out, L), jnp.float32)
    params2 = init_params(k_p2, C_out, C_out, ksz)
    packed2 = prepare_packed_params(params2, C_out, C_out)
    y2 = causal_convolution_block_forward(
        x2, packed2, kernel_size=ksz, dilation=dil,
        out_channels=C_out, final=True, tile_l=8)
    jax.block_until_ready(y2)
    assert y2.shape == (B, C_out, L)
    ref2 = reference_forward(x2, params2, ksz, dil, final=True)
    err2 = float(jnp.max(jnp.abs(y2 - ref2)))
    assert jnp.allclose(y2, ref2, atol=5e-2, rtol=5e-2), err2

    print("KERNEL_OK")
</pallas_src>

<mosaic_0001>
module attributes {stable_mosaic.version = 11 : i64} {
  func.func @kernel(%arg0: i32, %arg1: i32, %arg2: memref<1x8x8xbf16, #tpu.memory_space<vmem>>, %arg3: memref<3x8x128xbf16, #tpu.memory_space<vmem>>, %arg4: memref<1x128xf32, #tpu.memory_space<vmem>>, %arg5: memref<3x128x128xbf16, #tpu.memory_space<vmem>>, %arg6: memref<1x128xf32, #tpu.memory_space<vmem>>, %arg7: memref<8x128xbf16, #tpu.memory_space<vmem>>, %arg8: memref<1x128xf32, #tpu.memory_space<vmem>>, %arg9: memref<1x8x128xf32, #tpu.memory_space<vmem>>, %arg10: memref<16x8xbf16, #tpu.memory_space<vmem>>, %arg11: memref<16x128xbf16, #tpu.memory_space<vmem>>) attributes {dimension_semantics = [#tpu.dimension_semantics<parallel>, #tpu.dimension_semantics<arbitrary>], iteration_bounds = array<i64: 2, 2>, scalar_prefetch = 0 : i64, scratch_operands = 2 : i64, tpu.core_type = #tpu.core_type<tc>, window_params = [{transform_indices = @transform_0, window_bounds = array<i64: 1, 8, 8>}, {pipeline_mode = #tpu.pipeline_mode<synchronous>, transform_indices = @transform_1, window_bounds = array<i64: 3, 8, 128>}, {pipeline_mode = #tpu.pipeline_mode<synchronous>, transform_indices = @transform_2, window_bounds = array<i64: 1, 128>}, {pipeline_mode = #tpu.pipeline_mode<synchronous>, transform_indices = @transform_3, window_bounds = array<i64: 3, 128, 128>}, {pipeline_mode = #tpu.pipeline_mode<synchronous>, transform_indices = @transform_4, window_bounds = array<i64: 1, 128>}, {pipeline_mode = #tpu.pipeline_mode<synchronous>, transform_indices = @transform_5, window_bounds = array<i64: 8, 128>}, {pipeline_mode = #tpu.pipeline_mode<synchronous>, transform_indices = @transform_6, window_bounds = array<i64: 1, 128>}, {transform_indices = @transform_7, window_bounds = array<i64: 1, 8, 128>}]} {
    %c0_i32 = arith.constant 0 : i32
    %0 = arith.cmpi eq, %arg1, %c0_i32 : i32
    %1 = arith.extui %0 : i1 to i32
    %c0_i32_0 = arith.constant 0 : i32
    %2 = arith.cmpi ne, %1, %c0_i32_0 : i32
    scf.if %2 {
      %cst_66 = arith.constant 0.000000e+00 : bf16
      %82 = vector.broadcast %cst_66 : bf16 to vector<4x8xbf16>
      %c4_67 = arith.constant 4 : index
      %c0_68 = arith.constant 0 : index
      %83 = vector.load %arg10[%c4_67, %c0_68] : memref<16x8xbf16, #tpu.memory_space<vmem>>, vector<4x8xbf16>
      tpu.vector_store %arg10[%c4_67, %c0_68], %82 {strides = array<i32>} : memref<16x8xbf16, #tpu.memory_space<vmem>>, vector<4x8xbf16>,
      %cst_69 = arith.constant 0.000000e+00 : bf16
      %84 = vector.broadcast %cst_69 : bf16 to vector<4x128xbf16>
      %c4_70 = arith.constant 4 : index
      %c0_71 = arith.constant 0 : index
      %85 = vector.load %arg11[%c4_70, %c0_71] : memref<16x128xbf16, #tpu.memory_space<vmem>>, vector<4x128xbf16>
      tpu.vector_store %arg11[%c4_70, %c0_71], %84 {strides = array<i32>} : memref<16x128xbf16, #tpu.memory_space<vmem>>, vector<4x128xbf16>,
    } else {
    }
    %c0 = arith.constant 0 : index
    %c0_1 = arith.constant 0 : index
    %c0_2 = arith.constant 0 : index
    %3 = vector.load %arg2[%c0, %c0_1, %c0_2] : memref<1x8x8xbf16, #tpu.memory_space<vmem>>, vector<1x8x8xbf16>
    %4 = vector.shape_cast %3 : vector<1x8x8xbf16> to vector<8x8xbf16>
    %c8 = arith.constant 8 : index
    %c0_3 = arith.constant 0 : index
    %5 = vector.load %arg10[%c8, %c0_3] : memref<16x8xbf16, #tpu.memory_space<vmem>>, vector<8x8xbf16>
    tpu.vector_store %arg10[%c8, %c0_3], %4 {strides = array<i32>} : memref<16x8xbf16, #tpu.memory_space<vmem>>, vector<8x8xbf16>,
    %c4 = arith.constant 4 : index
    %c0_4 = arith.constant 0 : index
    %6 = vector.load %arg10[%c4, %c0_4] : memref<16x8xbf16, #tpu.memory_space<vmem>>, vector<8x8xbf16>
    %c0_5 = arith.constant 0 : index
    %c0_6 = arith.constant 0 : index
    %c0_7 = arith.constant 0 : index
    %7 = vector.load %arg3[%c0_5, %c0_6, %c0_7] : memref<3x8x128xbf16, #tpu.memory_space<vmem>>, vector<1x8x128xbf16>
    %8 = vector.shape_cast %7 : vector<1x8x128xbf16> to vector<8x128xbf16>
    %cst = arith.constant dense<0.000000e+00> : vector<8x128xf32>
    %9 = tpu.matmul %6, %8, %cst {dimension_numbers = #tpu.dot_dimension_numbers<[1], [0], [0], [1], [0, 0, 1, 1], [], []>} : vector<8x8xbf16>, vector<8x128xbf16>, vector<8x128xf32> -> vector<8x128xf32>
    %c6 = arith.constant 6 : index
    %c0_8 = arith.constant 0 : index
    %10 = vector.load %arg10[%c6, %c0_8] : memref<16x8xbf16, #tpu.memory_space<vmem>>, vector<8x8xbf16>
    %c1 = arith.constant 1 : index
    %c0_9 = arith.constant 0 : index
    %c0_10 = arith.constant 0 : index
    %11 = vector.load %arg3[%c1, %c0_9, %c0_10] : memref<3x8x128xbf16, #tpu.memory_space<vmem>>, vector<1x8x128xbf16>
    %12 = vector.shape_cast %11 : vector<1x8x128xbf16> to vector<8x128xbf16>
    %cst_11 = arith.constant dense<0.000000e+00> : vector<8x128xf32>
    %13 = tpu.matmul %10, %12, %cst_11 {dimension_numbers = #tpu.dot_dimension_numbers<[1], [0], [0], [1], [0, 0, 1, 1], [], []>} : vector<8x8xbf16>, vector<8x128xbf16>, vector<8x128xf32> -> vector<8x128xf32>
    %14 = arith.addf %9, %13 : vector<8x128xf32>
    %c8_12 = arith.constant 8 : index
    %c0_13 = arith.constant 0 : index
    %15 = vector.load %arg10[%c8_12, %c0_13] : memref<16x8xbf16, #tpu.memory_space<vmem>>, vector<8x8xbf16>
    %c2 = arith.constant 2 : index
    %c0_14 = arith.constant 0 : index
    %c0_15 = arith.constant 0 : index
    %16 = vector.load %arg3[%c2, %c0_14, %c0_15] : memref<3x8x128xbf16, #tpu.memory_space<vmem>>, vector<1x8x128xbf16>
    %17 = vector.shape_cast %16 : vector<1x8x128xbf16> to vector<8x128xbf16>
    %cst_16 = arith.constant dense<0.000000e+00> : vector<8x128xf32>
    %18 = tpu.matmul %15, %17, %cst_16 {dimension_numbers = #tpu.dot_dimension_numbers<[1], [0], [0], [1], [0, 0, 1, 1], [], []>} : vector<8x8xbf16>, vector<8x128xbf16>, vector<8x128xf32> -> vector<8x128xf32>
    %19 = arith.addf %14, %18 : vector<8x128xf32>
    %c0_17 = arith.constant 0 : index
    %c0_18 = arith.constant 0 : index
    %20 = vector.load %arg4[%c0_17, %c0_18] : memref<1x128xf32, #tpu.memory_space<vmem>>, vector<1x128xf32>
    %21 = vector.broadcast %20 : vector<1x128xf32> to vector<8x128xf32>
    %22 = arith.addf %19, %21 : vector<8x128xf32>
    %cst_19 = arith.constant 5.000000e-01 : f32
    %23 = vector.broadcast %cst_19 : f32 to vector<8x128xf32>
    %24 = arith.mulf %23, %22 : vector<8x128xf32>
    %cst_20 = arith.constant 4.471500e-02 : f32
    %25 = vector.broadcast %cst_20 : f32 to vector<8x128xf32>
    %26 = arith.mulf %25, %22 : vector<8x128xf32>
    %27 = arith.mulf %26, %22 : vector<8x128xf32>
    %28 = arith.mulf %27, %22 : vector<8x128xf32>
    %29 = arith.addf %22, %28 : vector<8x128xf32>
    %cst_21 = arith.constant 0.797884583 : f32
    %30 = vector.broadcast %cst_21 : f32 to vector<8x128xf32>
    %31 = arith.mulf %30, %29 : vector<8x128xf32>
    %32 = math.tanh %31 : vector<8x128xf32>
    %cst_22 = arith.constant 1.000000e+00 : f32
    %33 = vector.broadcast %cst_22 : f32 to vector<8x128xf32>
    %34 = arith.addf %33, %32 : vector<8x128xf32>
    %35 = arith.mulf %24, %34 : vector<8x128xf32>
    %36 = arith.truncf %35 : vector<8x128xf32> to vector<8x128xbf16>
    %c8_23 = arith.constant 8 : index
    %c0_24 = arith.constant 0 : index
    %37 = vector.load %arg11[%c8_23, %c0_24] : memref<16x128xbf16, #tpu.memory_space<vmem>>, vector<8x128xbf16>
    tpu.vector_store %arg11[%c8_23, %c0_24], %36 {strides = array<i32>} : memref<16x128xbf16, #tpu.memory_space<vmem>>, vector<8x128xbf16>,
    %c4_25 = arith.constant 4 : index
    %c0_26 = arith.constant 0 : index
    %38 = vector.load %arg11[%c4_25, %c0_26] : memref<16x128xbf16, #tpu.memory_space<vmem>>, vector<8x128xbf16>
    %c0_27 = arith.constant 0 : index
    %c0_28 = arith.constant 0 : index
    %c0_29 = arith.constant 0 : index
    %39 = vector.load %arg5[%c0_27, %c0_28, %c0_29] : memref<3x128x128xbf16, #tpu.memory_space<vmem>>, vector<1x128x128xbf16>
    %40 = vector.shape_cast %39 : vector<1x128x128xbf16> to vector<128x128xbf16>
    %cst_30 = arith.constant dense<0.000000e+00> : vector<8x128xf32>
    %41 = tpu.matmul %38, %40, %cst_30 {dimension_numbers = #tpu.dot_dimension_numbers<[1], [0], [0], [1], [0, 0, 1, 1], [], []>} : vector<8x128xbf16>, vector<128x128xbf16>, vector<8x128xf32> -> vector<8x128xf32>
    %c6_31 = arith.constant 6 : index
    %c0_32 = arith.constant 0 : index
    %42 = vector.load %arg11[%c6_31, %c0_32] : memref<16x128xbf16, #tpu.memory_space<vmem>>, vector<8x128xbf16>
    %c1_33 = arith.constant 1 : index
    %c0_34 = arith.constant 0 : index
    %c0_35 = arith.constant 0 : index
    %43 = vector.load %arg5[%c1_33, %c0_34, %c0_35] : memref<3x128x128xbf16, #tpu.memory_space<vmem>>, vector<1x128x128xbf16>
    %44 = vector.shape_cast %43 : vector<1x128x128xbf16> to vector<128x128xbf16>
    %cst_36 = arith.constant dense<0.000000e+00> : vector<8x128xf32>
    %45 = tpu.matmul %42, %44, %cst_36 {dimension_numbers = #tpu.dot_dimension_numbers<[1], [0], [0], [1], [0, 0, 1, 1], [], []>} : vector<8x128xbf16>, vector<128x128xbf16>, vector<8x128xf32> -> vector<8x128xf32>
    %46 = arith.addf %41, %45 : vector<8x128xf32>
    %c8_37 = arith.constant 8 : index
    %c0_38 = arith.constant 0 : index
    %47 = vector.load %arg11[%c8_37, %c0_38] : memref<16x128xbf16, #tpu.memory_space<vmem>>, vector<8x128xbf16>
    %c2_39 = arith.constant 2 : index
    %c0_40 = arith.constant 0 : index
    %c0_41 = arith.constant 0 : index
    %48 = vector.load %arg5[%c2_39, %c0_40, %c0_41] : memref<3x128x128xbf16, #tpu.memory_space<vmem>>, vector<1x128x128xbf16>
    %49 = vector.shape_cast %48 : vector<1x128x128xbf16> to vector<128x128xbf16>
    %cst_42 = arith.constant dense<0.000000e+00> : vector<8x128xf32>
    %50 = tpu.matmul %47, %49, %cst_42 {dimension_numbers = #tpu.dot_dimension_numbers<[1], [0], [0], [1], [0, 0, 1, 1], [], []>} : vector<8x128xbf16>, vector<128x128xbf16>, vector<8x128xf32> -> vector<8x128xf32>
    %51 = arith.addf %46, %50 : vector<8x128xf32>
    %c0_43 = arith.constant 0 : index
    %c0_44 = arith.constant 0 : index
    %52 = vector.load %arg6[%c0_43, %c0_44] : memref<1x128xf32, #tpu.memory_space<vmem>>, vector<1x128xf32>
    %53 = vector.broadcast %52 : vector<1x128xf32> to vector<8x128xf32>
    %54 = arith.addf %51, %53 : vector<8x128xf32>
    %cst_45 = arith.constant 5.000000e-01 : f32
    %55 = vector.broadcast %cst_45 : f32 to vector<8x128xf32>
    %56 = arith.mulf %55, %54 : vector<8x128xf32>
    %cst_46 = arith.constant 4.471500e-02 : f32
    %57 = vector.broadcast %cst_46 : f32 to vector<8x128xf32>
    %58 = arith.mulf %57, %54 : vector<8x128xf32>
    %59 = arith.mulf %58, %54 : vector<8x128xf32>
    %60 = arith.mulf %59, %54 : vector<8x128xf32>
    %61 = arith.addf %54, %60 : vector<8x128xf32>
    %cst_47 = arith.constant 0.797884583 : f32
    %62 = vector.broadcast %cst_47 : f32 to vector<8x128xf32>
    %63 = arith.mulf %62, %61 : vector<8x128xf32>
    %64 = math.tanh %63 : vector<8x128xf32>
    %cst_48 = arith.constant 1.000000e+00 : f32
    %65 = vector.broadcast %cst_48 : f32 to vector<8x128xf32>
    %66 = arith.addf %65, %64 : vector<8x128xf32>
    %67 = arith.mulf %56, %66 : vector<8x128xf32>
    %c8_49 = arith.constant 8 : index
    %c0_50 = arith.constant 0 : index
    %68 = vector.load %arg10[%c8_49, %c0_50] : memref<16x8xbf16, #tpu.memory_space<vmem>>, vector<8x8xbf16>
    %c0_51 = arith.constant 0 : index
    %c0_52 = arith.constant 0 : index
    %69 = vector.load %arg7[%c0_51, %c0_52] : memref<8x128xbf16, #tpu.memory_space<vmem>>, vector<8x128xbf16>
    %cst_53 = arith.constant dense<0.000000e+00> : vector<8x128xf32>
    %70 = tpu.matmul %68, %69, %cst_53 {dimension_numbers = #tpu.dot_dimension_numbers<[1], [0], [0], [1], [0, 0, 1, 1], [], []>} : vector<8x8xbf16>, vector<8x128xbf16>, vector<8x128xf32> -> vector<8x128xf32>
    %c0_54 = arith.constant 0 : index
    %c0_55 = arith.constant 0 : index
    %71 = vector.load %arg8[%c0_54, %c0_55] : memref<1x128xf32, #tpu.memory_space<vmem>>, vector<1x128xf32>
    %72 = vector.broadcast %71 : vector<1x128xf32> to vector<8x128xf32>
    %73 = arith.addf %70, %72 : vector<8x128xf32>
    %74 = arith.addf %67, %73 : vector<8x128xf32>
    %c0_56 = arith.constant 0 : index
    %c0_57 = arith.constant 0 : index
    %c0_58 = arith.constant 0 : index
    %75 = vector.load %arg9[%c0_56, %c0_57, %c0_58] : memref<1x8x128xf32, #tpu.memory_space<vmem>>, vector<1x8x128xf32>
    %76 = vector.shape_cast %75 : vector<1x8x128xf32> to vector<8x128xf32>
    %77 = vector.shape_cast %74 : vector<8x128xf32> to vector<1x8x128xf32>
    tpu.vector_store %arg9[%c0_56, %c0_57, %c0_58], %77 {strides = array<i32>} : memref<1x8x128xf32, #tpu.memory_space<vmem>>, vector<1x8x128xf32>,
    %c12 = arith.constant 12 : index
    %c0_59 = arith.constant 0 : index
    %78 = vector.load %arg10[%c12, %c0_59] : memref<16x8xbf16, #tpu.memory_space<vmem>>, vector<4x8xbf16>
    %c4_60 = arith.constant 4 : index
    %c0_61 = arith.constant 0 : index
    %79 = vector.load %arg10[%c4_60, %c0_61] : memref<16x8xbf16, #tpu.memory_space<vmem>>, vector<4x8xbf16>
    tpu.vector_store %arg10[%c4_60, %c0_61], %78 {strides = array<i32>} : memref<16x8xbf16, #tpu.memory_space<vmem>>, vector<4x8xbf16>,
    %c12_62 = arith.constant 12 : index
    %c0_63 = arith.constant 0 : index
    %80 = vector.load %arg11[%c12_62, %c0_63] : memref<16x128xbf16, #tpu.memory_space<vmem>>, vector<4x128xbf16>
    %c4_64 = arith.constant 4 : index
    %c0_65 = arith.constant 0 : index
    %81 = vector.load %arg11[%c4_64, %c0_65] : memref<16x128xbf16, #tpu.memory_space<vmem>>, vector<4x128xbf16>
    tpu.vector_store %arg11[%c4_64, %c0_65], %80 {strides = array<i32>} : memref<16x128xbf16, #tpu.memory_space<vmem>>, vector<4x128xbf16>,
    return
  }
  func.func @transform_0(%arg0: i32, %arg1: i32) -> (i32, i32, i32) {
    %c0_i32 = arith.constant 0 : i32
    %c0_i32_0 = arith.constant 0 : i32
    return %arg0, %arg1, %c0_i32 : i32, i32, i32
  }
  func.func @transform_1(%arg0: i32, %arg1: i32) -> (i32, i32, i32) {
    %c0_i32 = arith.constant 0 : i32
    %c0_i32_0 = arith.constant 0 : i32
    %c0_i32_1 = arith.constant 0 : i32
    %c0_i32_2 = arith.constant 0 : i32
    return %c0_i32, %c0_i32_0, %c0_i32_1 : i32, i32, i32
  }
  func.func @transform_2(%arg0: i32, %arg1: i32) -> (i32, i32) {
    %c0_i32 = arith.constant 0 : i32
    %c0_i32_0 = arith.constant 0 : i32
    %c0_i32_1 = arith.constant 0 : i32
    return %c0_i32, %c0_i32_0 : i32, i32
  }
  func.func @transform_3(%arg0: i32, %arg1: i32) -> (i32, i32, i32) {
    %c0_i32 = arith.constant 0 : i32
    %c0_i32_0 = arith.constant 0 : i32
    %c0_i32_1 = arith.constant 0 : i32
    %c0_i32_2 = arith.constant 0 : i32
    return %c0_i32, %c0_i32_0, %c0_i32_1 : i32, i32, i32
  }
  func.func @transform_4(%arg0: i32, %arg1: i32) -> (i32, i32) {
    %c0_i32 = arith.constant 0 : i32
    %c0_i32_0 = arith.constant 0 : i32
    %c0_i32_1 = arith.constant 0 : i32
    return %c0_i32, %c0_i32_0 : i32, i32
  }
  func.func @transform_5(%arg0: i32, %arg1: i32) -> (i32, i32) {
    %c0_i32 = arith.constant 0 : i32
    %c0_i32_0 = arith.constant 0 : i32
    %c0_i32_1 = arith.constant 0 : i32
    return %c0_i32, %c0_i32_0 : i32, i32
  }
  func.func @transform_6(%arg0: i32, %arg1: i32) -> (i32, i32) {
    %c0_i32 = arith.constant 0 : i32
    %c0_i32_0 = arith.constant 0 : i32
    %c0_i32_1 = arith.constant 0 : i32
    return %c0_i32, %c0_i32_0 : i32, i32
  }
  func.func @transform_7(%arg0: i32, %arg1: i32) -> (i32, i32, i32) {
    %c0_i32 = arith.constant 0 : i32
    %c0_i32_0 = arith.constant 0 : i32
    return %arg0, %arg1, %c0_i32 : i32, i32, i32
  }
}

</mosaic_0001>

<llo_original>
// kernel: tpu_custom_call.1
$region0: #{tpu_custom_call.1}
  #allocation0 [shape = 'u32[]', space=smem, size = 0x4, offset = 0x4, fixed_abs, tag = 'smem constant byte address 0x4 - core index']
  #allocation1 [shape = 'u32[144,128]{1,0:T(1,128)}', space=vmem, size = 0x12000, scoped, tag = 'internal scratch']
  #allocation2 [shape = 'bf16[16,8]{1,0:T(8,128)(2,1)}', space=vmem, size = 0x1000, scoped, tag = 'scratch operand']
  #allocation3 [shape = 'bf16[16,128]{1,0:T(8,128)(2,1)}', space=vmem, size = 0x1000, scoped, tag = 'scratch operand']
  %s0 = inlined_call_operand.vmem [shape: bf16[2,16,8], index: 0, kind: input, shape index: {}]
  %s1 = inlined_call_operand.vmem [shape: bf16[3,8,128], index: 1, kind: input, shape index: {}]
  %s2 = inlined_call_operand.vmem [shape: f32[1,128], index: 2, kind: input, shape index: {}]
  %s3 = inlined_call_operand.hbm [shape: bf16[3,128,128], index: 3, kind: input, shape index: {}]
  %s4 = inlined_call_operand.vmem [shape: f32[1,128], index: 4, kind: input, shape index: {}]
  %s5 = inlined_call_operand.vmem [shape: bf16[8,128], index: 5, kind: input, shape index: {}]
  %s6 = inlined_call_operand.vmem [shape: f32[1,128], index: 6, kind: input, shape index: {}]
  %s7 = inlined_call_operand.hbm [shape: f32[2,16,128], index: 7, kind: output, shape index: {}]
  %s8 = sld [smem:[#allocation0]]
  $region69: #{tpu_custom_call.1} parent=0
    _
  %s10 = ssub.s32 1, %s8
  %s11 = scalar_select 0, %s10, %s8
  $region1: #{tpu_custom_call.1} parent=0
    #allocation4 [shape = 'u8[98304]{0}', space=vmem, size = 0x18000, scoped, tag = 'input window, operand 3, single buffered']
    #allocation5 [shape = 's32[2]{0}', space=sflag, size = 0x8, scoped, tag = 'scoped memory for tpu_custom_call.1']
    #allocation6 [shape = 's32[2]{0}', space=sflag, size = 0x8, scoped, tag = 'scoped memory for tpu_custom_call.1']
    #allocation7 [shape = 'u8[8192]{0}', space=vmem, size = 0x2000, scoped, tag = 'output window, operand 0']
    %12 = vsyncpa [#allocation5], 0
    %13 = vsyncpa [#allocation6], 0
    %s14 = scalar_lea.sflag [#allocation6], 1
    %15 = vsyncpa %s14, 0
    loop: start=0, step=1, limit=6
    $region2: #{tpu_custom_call.1} parent=1 // loop_pre_header
      _
    $region3: #{tpu_custom_call.1} parent=1 // loop_header
      %s17 = sphi 0, %s21
      %p18 = scmp.ge.s32.totalorder %s17, 6
      %s24 = sphi 0, %s36
      %s25 = sphi 0, %s32
      %s26 = sphi 0, %s24
      %s27 = sphi 0, %s25
      %s28 = sphi 0, %s26
      %s29 = sphi 0, %s27
      %s41 = sphi 0, %s43
      %s44 = sphi 0, %s41
      %s45 = sphi 0, %s44
      %s61 = sphi 0, %s45
      %s65 = sphi 0, %s65
      %s67 = sphi 0, %s65
      %s68 = sphi 0, %s67
      %s82 = sphi 0, %s68
      %s86 = sphi 0, %s86
      %s88 = sphi 0, %s86
      %s89 = sphi 0, %s88
      %s103 = sphi 0, %s89
      %s107 = sphi 0, %s107
      %s109 = sphi 0, %s107
      %s110 = sphi 0, %s109
      %s124 = sphi 0, %s110
      %s128 = sphi 0, %s128
      %s130 = sphi 0, %s128
      %s131 = sphi 0, %s130
      %s145 = sphi 0, %s131
      %s149 = sphi 0, %s149
      %s151 = sphi 0, %s149
      %s152 = sphi 0, %s151
      %s166 = sphi 0, %s152
      %s170 = sphi 0, %s170
      %s172 = sphi 0, %s170
      %s173 = sphi 0, %s172
      %s187 = sphi 0, %s173
      %s195 = sphi 0, %s197
      %s198 = sphi 0, %s195
      %s199 = sphi 0, %s198
      %s215 = sphi 0, %s199
    $region4: #{tpu_custom_call.1} parent=1 // loop_header_branch
      %20 = sbr.rel (%p18) target = $region8
    $region5: #{tpu_custom_call.1} parent=1 // loop_body
      %s22 = ssub.s32 %s17, 1
      %s23 = ssub.s32 %s17, 2
      %s30 = sadd.s32 1, %s25
      %p31 = scmp.ge.s32.totalorder %s30, 2
      %s32 = scalar_select %p31, 0, %s30
      %s33 = sadd.s32 1, %s24
      %s34 = scalar_select %p31, %s33, %s24
      %p35 = scmp.ge.s32.totalorder %s34, 2
      %s36 = scalar_select %p35, 0, %s34
      %s37 = ssub.s32 %s24, %s36
      %s38 = ssub.s32 %s25, %s32
      %s39 = sor.u32 %s37, %s38
      %p40 = scmp.eq.s32.totalorder %s39, 0
      %s42 = sadd.s32 %s41, 1
      %s43 = scalar_select %p40, %s41, %s42
      %p46 = pneg %p40
      %p47 = scmp.eq.s32.totalorder %s17, 3
      %p48 = por %p46, %p47
      %p49 = scmp.ne.s32.totalorder %s41, %s44
      %p50 = scmp.eq.s32.totalorder %s17, 0
      %p51 = por %p49, %p50
      %p52 = scmp.ne.s32.totalorder %s41, %s44
      %p53 = scmp.eq.s32.totalorder %s22, 3
      %p54 = por %p52, %p53
      %p55 = scmp.ne.s32.totalorder %s44, %s45
      %p56 = scmp.eq.s32.totalorder %s22, 0
      %p57 = por %p55, %p56
      %p58 = scmp.ne.s32.totalorder %s44, %s45
      %p59 = scmp.eq.s32.totalorder %s23, 3
      %p60 = por %p58, %p59
      %p62 = scmp.ne.s32.totalorder %s45, %s61
      %p63 = scmp.eq.s32.totalorder %s23, 0
      %p64 = por %p62, %p63
      %s66 = sadd.s32 %s65, 1
      %p69 = scmp.eq.s32.totalorder %s17, 3
      %p70 = scmp.ne.s32.totalorder %s65, %s67
      %p71 = scmp.eq.s32.totalorder %s17, 0
      %p72 = por %p70, %p71
      %p73 = scmp.ne.s32.totalorder %s65, %s67
      %p74 = scmp.eq.s32.totalorder %s22, 3
      %p75 = por %p73, %p74
      %p76 = scmp.ne.s32.totalorder %s67, %s68
      %p77 = scmp.eq.s32.totalorder %s22, 0
      %p78 = por %p76, %p77
      %p79 = scmp.ne.s32.totalorder %s67, %s68
      %p80 = scmp.eq.s32.totalorder %s23, 3
      %p81 = por %p79, %p80
      %p83 = scmp.ne.s32.totalorder %s68, %s82
      %p84 = scmp.eq.s32.totalorder %s23, 0
      %p85 = por %p83, %p84
      %s87 = sadd.s32 %s86, 1
      %p90 = scmp.eq.s32.totalorder %s17, 3
      %p91 = scmp.ne.s32.totalorder %s86, %s88
      %p92 = scmp.eq.s32.totalorder %s17, 0
      %p93 = por %p91, %p92
      %p94 = scmp.ne.s32.totalorder %s86, %s88
      %p95 = scmp.eq.s32.totalorder %s22, 3
      %p96 = por %p94, %p95
      %p97 = scmp.ne.s32.totalorder %s88, %s89
      %p98 = scmp.eq.s32.totalorder %s22, 0
      %p99 = por %p97, %p98
      %p100 = scmp.ne.s32.totalorder %s88, %s89
      %p101 = scmp.eq.s32.totalorder %s23, 3
      %p102 = por %p100, %p101
      %p104 = scmp.ne.s32.totalorder %s89, %s103
      %p105 = scmp.eq.s32.totalorder %s23, 0
      %p106 = por %p104, %p105
      %s108 = sadd.s32 %s107, 1
      %p111 = scmp.eq.s32.totalorder %s17, 3
      %p112 = scmp.ne.s32.totalorder %s107, %s109
      %p113 = scmp.eq.s32.totalorder %s17, 0
      %p114 = por %p112, %p113
      %p115 = scmp.ne.s32.totalorder %s107, %s109
      %p116 = scmp.eq.s32.totalorder %s22, 3
      %p117 = por %p115, %p116
      %p118 = scmp.ne.s32.totalorder %s109, %s110
      %p119 = scmp.eq.s32.totalorder %s22, 0
      %p120 = por %p118, %p119
      %p121 = scmp.ne.s32.totalorder %s109, %s110
      %p122 = scmp.eq.s32.totalorder %s23, 3
      %p123 = por %p121, %p122
      %p125 = scmp.ne.s32.totalorder %s110, %s124
      %p126 = scmp.eq.s32.totalorder %s23, 0
      %p127 = por %p125, %p126
      %s129 = sadd.s32 %s128, 1
      %p132 = scmp.eq.s32.totalorder %s17, 3
      %p133 = scmp.ne.s32.totalorder %s128, %s130
      %p134 = scmp.eq.s32.totalorder %s17, 0
      %p135 = por %p133, %p134
      %p136 = scmp.ne.s32.totalorder %s128, %s130
      %p137 = scmp.eq.s32.totalorder %s22, 3
      %p138 = por %p136, %p137
      %p139 = scmp.ne.s32.totalorder %s130, %s131
      %p140 = scmp.eq.s32.totalorder %s22, 0
      %p141 = por %p139, %p140
      %p142 = scmp.ne.s32.totalorder %s130, %s131
      %p143 = scmp.eq.s32.totalorder %s23, 3
      %p144 = por %p142, %p143
      %p146 = scmp.ne.s32.totalorder %s131, %s145
      %p147 = scmp.eq.s32.totalorder %s23, 0
      %p148 = por %p146, %p147
      %s150 = sadd.s32 %s149, 1
      %p153 = scmp.eq.s32.totalorder %s17, 3
      %p154 = scmp.ne.s32.totalorder %s149, %s151
      %p155 = scmp.eq.s32.totalorder %s17, 0
      %p156 = por %p154, %p155
      %p157 = scmp.ne.s32.totalorder %s149, %s151
      %p158 = scmp.eq.s32.totalorder %s22, 3
      %p159 = por %p157, %p158
      %p160 = scmp.ne.s32.totalorder %s151, %s152
      %p161 = scmp.eq.s32.totalorder %s22, 0
      %p162 = por %p160, %p161
      %p163 = scmp.ne.s32.totalorder %s151, %s152
      %p164 = scmp.eq.s32.totalorder %s23, 3
      %p165 = por %p163, %p164
      %p167 = scmp.ne.s32.totalorder %s152, %s166
      %p168 = scmp.eq.s32.totalorder %s23, 0
      %p169 = por %p167, %p168
      %s171 = sadd.s32 %s170, 1
      %p174 = scmp.eq.s32.totalorder %s17, 3
      %p175 = scmp.ne.s32.totalorder %s170, %s172
      %p176 = scmp.eq.s32.totalorder %s17, 0
      %p177 = por %p175, %p176
      %p178 = scmp.ne.s32.totalorder %s170, %s172
      %p179 = scmp.eq.s32.totalorder %s22, 3
      %p180 = por %p178, %p179
      %p181 = scmp.ne.s32.totalorder %s172, %s173
      %p182 = scmp.eq.s32.totalorder %s22, 0
      %p183 = por %p181, %p182
      %p184 = scmp.ne.s32.totalorder %s172, %s173
      %p185 = scmp.eq.s32.totalorder %s23, 3
      %p186 = por %p184, %p185
      %p188 = scmp.ne.s32.totalorder %s173, %s187
      %p189 = scmp.eq.s32.totalorder %s23, 0
      %p190 = por %p188, %p189
      %s191 = ssub.s32 %s24, %s36
      %s192 = ssub.s32 %s25, %s32
      %s193 = sor.u32 %s191, %s192
      %p194 = scmp.eq.s32.totalorder %s193, 0
      %s196 = sadd.s32 %s195, 1
      %s197 = scalar_select %p194, %s195, %s196
      %p200 = pneg %p194
      %p201 = scmp.eq.s32.totalorder %s17, 3
      %p202 = por %p200, %p201
      %p203 = scmp.ne.s32.totalorder %s195, %s198
      %p204 = scmp.eq.s32.totalorder %s17, 0
      %p205 = por %p203, %p204
      %p206 = scmp.ne.s32.totalorder %s195, %s198
      %p207 = scmp.eq.s32.totalorder %s22, 3
      %p208 = por %p206, %p207
      %p209 = scmp.ne.s32.totalorder %s198, %s199
      %p210 = scmp.eq.s32.totalorder %s22, 0
      %p211 = por %p209, %p210
      %p212 = scmp.ne.s32.totalorder %s198, %s199
      %p213 = scmp.eq.s32.totalorder %s23, 3
      %p214 = por %p212, %p213
      %p216 = scmp.ne.s32.totalorder %s199, %s215
      %p217 = scmp.eq.s32.totalorder %s23, 0
      %p218 = por %p216, %p217
      %p219 = scmp.le.s32.totalorder 1, %s17
      %p220 = scmp.lt.s32.totalorder %s17, 5
      %p221 = pnand %p219, %p220
      %p222 = pneg %p221
      // Predicated region
      $region9: #{tpu_custom_call.1} parent=5 // pred_check
        _
      $region10: #{tpu_custom_call.1} parent=5 // pred_check_branch
        %224 = sbr.rel (%p221) target = $region12
      $region11: #{tpu_custom_call.1} parent=5 // pred_region
        %s225 = ssub.s32 %s17, 1
        // Predicated region
        $region13: #{tpu_custom_call.1} parent=11 // pred_check
          %p226 = pneg %p78
        $region14: #{tpu_custom_call.1} parent=11 // pred_check_branch
          %228 = sbr.rel (%p226) target = $region16
        $region15: #{tpu_custom_call.1} parent=11 // pred_region
          _
        $region16: #{tpu_custom_call.1} parent=11 // pred_fallthru
          _
        // Predicated region
        $region17: #{tpu_custom_call.1} parent=11 // pred_check
          %p229 = pneg %p99
        $region18: #{tpu_custom_call.1} parent=11 // pred_check_branch
          %231 = sbr.rel (%p229) target = $region20
        $region19: #{tpu_custom_call.1} parent=11 // pred_region
          _
        $region20: #{tpu_custom_call.1} parent=11 // pred_fallthru
          _
        // Predicated region
        $region21: #{tpu_custom_call.1} parent=11 // pred_check
          %p232 = pneg %p120
        $region22: #{tpu_custom_call.1} parent=11 // pred_check_branch
          %234 = sbr.rel (%p232) target = $region24
        $region23: #{tpu_custom_call.1} parent=11 // pred_region
          %s236 = ssub.s32 3072, 3072
          %237 = vsyncadd [#allocation5], %s236
          %s238 = sshll.u32 [#allocation4], 4
          %s239 = int_to_ptr.vmem [resolvable:$true] %s238
          %244 = dma.hbm_to_vmem [thread:$0]  %s3, 3072, %s239, [#allocation5], 64, 64, 4
        $region24: #{tpu_custom_call.1} parent=11 // pred_fallthru
          _
        // Predicated region
        $region25: #{tpu_custom_call.1} parent=11 // pred_check
          %p245 = pneg %p141
        $region26: #{tpu_custom_call.1} parent=11 // pred_check_branch
          %247 = sbr.rel (%p245) target = $region28
        $region27: #{tpu_custom_call.1} parent=11 // pred_region
          _
        $region28: #{tpu_custom_call.1} parent=11 // pred_fallthru
          _
        // Predicated region
        $region29: #{tpu_custom_call.1} parent=11 // pred_check
          %p248 = pneg %p162
        $region30: #{tpu_custom_call.1} parent=11 // pred_check_branch
          %250 = sbr.rel (%p248) target = $region32
        $region31: #{tpu_custom_call.1} parent=11 // pred_region
          _
        $region32: #{tpu_custom_call.1} parent=11 // pred_fallthru
          _
        // Predicated region
        $region33: #{tpu_custom_call.1} parent=11 // pred_check
          %p251 = pneg %p183
        $region34: #{tpu_custom_call.1} parent=11 // pred_check_branch
          %253 = sbr.rel (%p251) target = $region36
        $region35: #{tpu_custom_call.1} parent=11 // pred_region
          _
        $region36: #{tpu_custom_call.1} parent=11 // pred_fallthru
          _
      $region12: #{tpu_custom_call.1} parent=5 // pred_fallthru
        _
      %p254 = scmp.lt.s32.totalorder %s17, 4
      // Predicated region
      $region37: #{tpu_custom_call.1} parent=5 // pred_check
        %p255 = pneg %p254
      $region38: #{tpu_custom_call.1} parent=5 // pred_check_branch
        %257 = sbr.rel (%p255) target = $region40
      $region39: #{tpu_custom_call.1} parent=5 // pred_region
        // Predicated region
        $region41: #{tpu_custom_call.1} parent=39 // pred_check
          %p258 = pneg %p51
        $region42: #{tpu_custom_call.1} parent=39 // pred_check_branch
          %260 = sbr.rel (%p258) target = $region44
        $region43: #{tpu_custom_call.1} parent=39 // pred_region
          %p261 = scmp.lt.s32.totalorder %s24, 1
          %s262 = scalar_select %p261, %s24, 1
          %p263 = scmp.lt.s32.totalorder %s25, 1
          %s264 = scalar_select %p263, %s25, 1
          %s265 = smul.addr %s262, 2
          %s266 = sadd.s32 %s264, %s265
          %s267 = smul.addr %s266, 4
          %s268 = scalar_lea.vmem %s0, %s267
        $region44: #{tpu_custom_call.1} parent=39 // pred_fallthru
          _
      $region40: #{tpu_custom_call.1} parent=5 // pred_fallthru
        _
      %p269 = scmp.le.s32.totalorder 1, %s17
      %p270 = scmp.lt.s32.totalorder %s17, 5
      %p271 = pnand %p269, %p270
      %p272 = pneg %p271
      // Predicated region
      $region45: #{tpu_custom_call.1} parent=5 // pred_check
        _
      $region46: #{tpu_custom_call.1} parent=5 // pred_check_branch
        %274 = sbr.rel (%p271) target = $region48
      $region47: #{tpu_custom_call.1} parent=5 // pred_region
        %s275 = ssub.s32 %s17, 1
        // Predicated region
        $region49: #{tpu_custom_call.1} parent=47 // pred_check
          %p276 = pneg %p120
        $region50: #{tpu_custom_call.1} parent=47 // pred_check_branch
          %278 = sbr.rel (%p276) target = $region52
        $region51: #{tpu_custom_call.1} parent=47 // pred_region
          %279 = dma.done [#allocation5], 3072
        $region52: #{tpu_custom_call.1} parent=47 // pred_fallthru
          _
        %p280 = scmp.lt.s32.totalorder %s26, 1
        %s281 = scalar_select %p280, %s26, 1
        %p282 = scmp.lt.s32.totalorder %s27, 1
        %s283 = scalar_select %p282, %s27, 1
        %s284 = smul.addr %s281, 2
        %s285 = sadd.s32 %s283, %s284
        %s286 = smul.addr %s285, 4
        %s287 = scalar_lea.vmem %s0, %s286
        %p288 = pneg %p57
        %p289 = pneg %p54
        %p290 = pneg %p78
        %p291 = pneg %p75
        %p292 = pneg %p99
        %p293 = pneg %p96
        %p294 = pneg %p120
        %p295 = pneg %p117
        %p296 = pneg %p141
        %p297 = pneg %p138
        %p298 = pneg %p162
        %p299 = pneg %p159
        %p300 = pneg %p183
        %p301 = pneg %p180
        %p302 = pneg %p211
        %p303 = pneg %p208
        %s304 = sand.u32 %s198, 1
        %s305 = scalar_lea.sflag [#allocation6], %s304
        %s306 = sand.u32 %s198, 1
        %s307 = smul.addr %s306, 8
        %s308 = scalar_lea.vmem [#allocation7], %s307
        %p309 = scmp.lt.s32.totalorder %s26, 1
        %s310 = scalar_select %p309, %s26, 1
        %p311 = scmp.lt.s32.totalorder %s27, 1
        %s312 = scalar_select %p311, %s27, 1
        %s313 = smul.addr %s310, 2
        %s314 = sadd.s32 %s312, %s313
        %s315 = smul.addr %s314, 4
        %s316 = scalar_lea.vmem %s0, %s315
        %p318 = scmp.eq.s32.totalorder %s27, 0
        // Predicated region
        $region53: #{tpu_custom_call.1} parent=47 // pred_check
          %p319 = pneg %p318
        $region54: #{tpu_custom_call.1} parent=47 // pred_check_branch
          %321 = sbr.rel (%p319) target = $region56
        $region55: #{tpu_custom_call.1} parent=47 // pred_region
          %vm322 = vcmask 60418
          %323 = vst.msk [vmem:[#allocation2] sm:$0xc] %vm322, 0
          %324 = vst [vmem:[#allocation3] sm:$0xc] 0
        $region56: #{tpu_custom_call.1} parent=47 // pred_fallthru
          _
        %v325 = vld [vmem:[%s316] sm:$0xf]
        %vm326 = vcmask 60416
        %327 = vst.msk [vmem:[#allocation2 + $0x4] sm:$0xf] %vm326, %v325
        %v328 = vld [vmem:[#allocation2] sm:$0xc]
        %v329 = vld [vmem:[#allocation2 + $0x4] sm:$0x3]
        %v330 = vld [vmem:[%s1] sm:$0xf]
        %v331 = vld [vmem:[#allocation2] sm:$0x8]
        %v332 = vld [vmem:[#allocation2 + $0x4] sm:$0x7]
        %s333 = scalar_lea.vmem %s1, 4
        %v334 = vld [vmem:[%s333] sm:$0xf]
        %v337 = vunpack.c.l.b16 %v331
        %v338 = vunpack.c.l.b16 %v332
        %v339 = vpack.c.b16 %v338, %v337
        %v340 = vrot.slane %v339, 3
        %vm341 = vcmask 64512
        %v343 = vsel %vm341, %v340, 0
        %vm345 = vcmask 1043456
        %v347 = vsel %vm345, %v334, 0
        %349 = vmatprep.subr.bf16.mxu0 0
        %350 = vmatpush1.bf16.msra.mxu0 0
        %351 = vmatprep.subr.bf16.mxu0 0
        %352 = vmatpush1.bf16.msra.mxu0 0
        %353 = vmatprep.subr.bf16.mxu0 0
        %354 = vmatpush1.bf16.msra.mxu0 0
        %355 = vmatprep.subr.bf16.mxu0 0
        %356 = vmatpush1.bf16.msra.mxu0 0
        %357 = vmatprep.subr.bf16.mxu0 0
        %358 = vmatpush1.bf16.msra.mxu0 0
        %359 = vmatprep.subr.bf16.mxu0 0
        %360 = vmatpush1.bf16.msra.mxu0 0
        %361 = vmatprep.subr.bf16.mxu0 0
        %362 = vmatpush1.bf16.msra.mxu0 0
        %363 = vmatprep.subr.bf16.mxu0 0
        %364 = vmatpush1.bf16.msra.mxu0 %v347
        %365 = vmatprep.subr.bf16.mxu0 0
        %366 = vmatpush2.bf16.msra.mxu0 0
        %367 = vmatprep.subr.bf16.mxu0 0
        %368 = vmatpush2.bf16.msra.mxu0 0
        %369 = vmatprep.subr.bf16.mxu0 0
        %370 = vmatpush2.bf16.msra.mxu0 0
        %371 = vmatprep.subr.bf16.mxu0 0
        %372 = vmatpush2.bf16.msra.mxu0 0
        %373 = vmatprep.subr.bf16.mxu0 0
        %374 = vmatpush2.bf16.msra.mxu0 0
        %375 = vmatprep.subr.bf16.mxu0 0
        %376 = vmatpush2.bf16.msra.mxu0 0
        %377 = vmatprep.subr.bf16.mxu0 0
        %378 = vmatpush2.bf16.msra.mxu0 0
        %379 = vmatprep.subr.bf16.mxu0 0
        %380 = vmatpush2.bf16.msra.mxu0 0
        %381 = vmatprep.mubr.bf16.mxu0 0
        %382 = vmatmul.mubr.bf16.gmra.mxu0 %v343
        %v383 = vpop.f32.mrf.mxu0
        %v384 = vadd.f32 0.0, %v383
        %v385 = vpop.f32.mrf.mxu0
        %v386 = vpop.f32.mrf.mxu0
        %v387 = vpop.f32.mrf.mxu0
        %388 = vdwg.mxu0
        %v391 = vunpack.c.l.b16 %v328
        %v392 = vunpack.c.l.b16 %v329
        %v393 = vpack.c.b16 %v392, %v391
        %v394 = vrot.slane %v393, 2
        %v396 = vsel %vm341, %v394, 0
        %v399 = vsel %vm345, %v330, 0
        %401 = vmatprep.subr.bf16.mxu0 0
        %402 = vmatpush1.bf16.msra.mxu0 0
        %403 = vmatprep.subr.bf16.mxu0 0
        %404 = vmatpush1.bf16.msra.mxu0 0
        %405 = vmatprep.subr.bf16.mxu0 0
        %406 = vmatpush1.bf16.msra.mxu0 0
        %407 = vmatprep.subr.bf16.mxu0 0
        %408 = vmatpush1.bf16.msra.mxu0 0
        %409 = vmatprep.subr.bf16.mxu0 0
        %410 = vmatpush1.bf16.msra.mxu0 0
        %411 = vmatprep.subr.bf16.mxu0 0
        %412 = vmatpush1.bf16.msra.mxu0 0
        %413 = vmatprep.subr.bf16.mxu0 0
        %414 = vmatpush1.bf16.msra.mxu0 0
        %415 = vmatprep.subr.bf16.mxu0 0
        %416 = vmatpush1.bf16.msra.mxu0 %v399
        %417 = vmatprep.subr.bf16.mxu0 0
        %418 = vmatpush2.bf16.msra.mxu0 0
        %419 = vmatprep.subr.bf16.mxu0 0
        %420 = vmatpush2.bf16.msra.mxu0 0
        %421 = vmatprep.subr.bf16.mxu0 0
        %422 = vmatpush2.bf16.msra.mxu0 0
        %423 = vmatprep.subr.bf16.mxu0 0
        %424 = vmatpush2.bf16.msra.mxu0 0
        %425 = vmatprep.subr.bf16.mxu0 0
        %426 = vmatpush2.bf16.msra.mxu0 0
        %427 = vmatprep.subr.bf16.mxu0 0
        %428 = vmatpush2.bf16.msra.mxu0 0
        %429 = vmatprep.subr.bf16.mxu0 0
        %430 = vmatpush2.bf16.msra.mxu0 0
        %431 = vmatprep.subr.bf16.mxu0 0
        %432 = vmatpush2.bf16.msra.mxu0 0
        %433 = vmatprep.mubr.bf16.mxu0 0
        %434 = vmatmul.mubr.bf16.gmra.mxu0 %v396
        %v435 = vpop.f32.mrf.mxu0
        %v436 = vadd.f32 %v384, %v435
        %v437 = vpop.f32.mrf.mxu0
        %v438 = vpop.f32.mrf.mxu0
        %v439 = vpop.f32.mrf.mxu0
        %440 = vdwg.mxu0
        %v441 = vld [vmem:[#allocation2 + $0x4] sm:$0xf]
        %s442 = scalar_lea.vmem %s1, 8
        %v443 = vld [vmem:[%s442] sm:$0xf]
        %v445 = vsel %vm341, %v441, 0
        %v448 = vsel %vm345, %v443, 0
        %450 = vmatprep.subr.bf16.mxu0 0
        %451 = vmatpush1.bf16.msra.mxu0 0
        %452 = vmatprep.subr.bf16.mxu0 0
        %453 = vmatpush1.bf16.msra.mxu0 0
        %454 = vmatprep.subr.bf16.mxu0 0
        %455 = vmatpush1.bf16.msra.mxu0 0
        %456 = vmatprep.subr.bf16.mxu0 0
        %457 = vmatpush1.bf16.msra.mxu0 0
        %458 = vmatprep.subr.bf16.mxu0 0
        %459 = vmatpush1.bf16.msra.mxu0 0
        %460 = vmatprep.subr.bf16.mxu0 0
        %461 = vmatpush1.bf16.msra.mxu0 0
        %462 = vmatprep.subr.bf16.mxu0 0
        %463 = vmatpush1.bf16.msra.mxu0 0
        %464 = vmatprep.subr.bf16.mxu0 0
        %465 = vmatpush1.bf16.msra.mxu0 %v448
        %466 = vmatprep.subr.bf16.mxu0 0
        %467 = vmatpush2.bf16.msra.mxu0 0
        %468 = vmatprep.subr.bf16.mxu0 0
        %469 = vmatpush2.bf16.msra.mxu0 0
        %470 = vmatprep.subr.bf16.mxu0 0
        %471 = vmatpush2.bf16.msra.mxu0 0
        %472 = vmatprep.subr.bf16.mxu0 0
        %473 = vmatpush2.bf16.msra.mxu0 0
        %474 = vmatprep.subr.bf16.mxu0 0
        %475 = vmatpush2.bf16.msra.mxu0 0
        %476 = vmatprep.subr.bf16.mxu0 0
        %477 = vmatpush2.bf16.msra.mxu0 0
        %478 = vmatprep.subr.bf16.mxu0 0
        %479 = vmatpush2.bf16.msra.mxu0 0
        %480 = vmatprep.subr.bf16.mxu0 0
        %481 = vmatpush2.bf16.msra.mxu0 0
        %482 = vmatprep.mubr.bf16.mxu0 0
        %483 = vmatmul.mubr.bf16.gmra.mxu0 %v445
        %v484 = vpop.f32.mrf.mxu0
        %v485 = vadd.f32 0.0, %v484
        %v486 = vpop.f32.mrf.mxu0
        %v487 = vpop.f32.mrf.mxu0
        %v488 = vpop.f32.mrf.mxu0
        %489 = vdwg.mxu0
        %v490 = vadd.f32 %v436, %v485
        %v491 = vld [vmem:[%s2] sm:$0x1]
        %v493 = vlaneseq
        %v494 = vshrl.u32 %v493, 7
        %v495 = vsub.s32 0, %v494
        %v496 = vrot.slane %v491, %v495
        %v498 = vadd.f32 %v490, %v496
        %v499 = vmul.f32 %v498, 0.5
        %v500 = vmul.f32 %v498, 0.044715
        %v501 = vmul.f32 %v500, %v498
        %v502 = vmul.f32 %v501, %v498
        %v503 = vadd.f32 %v498, %v502
        %v504 = vmul.f32 %v503, 0.7978846
        %v505 = vtanh.pop %v504
        %v506 = vadd.f32 %v505, 1.0
        %v507 = vmul.f32 %v499, %v506
        %v508 = vpack.c.bf16 %v507, %v507
        %509 = vst [vmem:[#allocation3 + $0x4] sm:$0xf] %v508
        %v510 = vld [vmem:[#allocation3] sm:$0xc]
        %v511 = vld [vmem:[#allocation3 + $0x4] sm:$0x3]
        %v512 = vld [vmem:[#allocation4] sm:$0xf]
        %v513 = vld [vmem:[#allocation4 + $0x4] sm:$0xf]
        %v514 = vld [vmem:[#allocation4 + $0x8] sm:$0xf]
        %v515 = vld [vmem:[#allocation4 + $0xc] sm:$0xf]
        %v516 = vld [vmem:[#allocation4 + $0x10] sm:$0xf]
        %v517 = vld [vmem:[#allocation4 + $0x14] sm:$0xf]
        %v518 = vld [vmem:[#allocation4 + $0x18] sm:$0xf]
        %v519 = vld [vmem:[#allocation4 + $0x1c] sm:$0xf]
        %v520 = vld [vmem:[#allocation4 + $0x20] sm:$0xf]
        %v521 = vld [vmem:[#allocation4 + $0x24] sm:$0xf]
        %v522 = vld [vmem:[#allocation4 + $0x28] sm:$0xf]
        %v523 = vld [vmem:[#allocation4 + $0x2c] sm:$0xf]
        %v524 = vld [vmem:[#allocation4 + $0x30] sm:$0xf]
        %v525 = vld [vmem:[#allocation4 + $0x34] sm:$0xf]
        %v526 = vld [vmem:[#allocation4 + $0x38] sm:$0xf]
        %v527 = vld [vmem:[#allocation4 + $0x3c] sm:$0xf]
        %v528 = vld [vmem:[#allocation3] sm:$0x8]
        %v529 = vld [vmem:[#allocation3 + $0x4] sm:$0x7]
        %s530 = scalar_lea.vmem [#allocation4], 64
        %v531 = vld [vmem:[%s530] sm:$0xf]
        %v532 = vld [vmem:[%s530 + $0x4] sm:$0xf]
        %v533 = vld [vmem:[%s530 + $0x8] sm:$0xf]
        %v534 = vld [vmem:[%s530 + $0xc] sm:$0xf]
        %v535 = vld [vmem:[%s530 + $0x10] sm:$0xf]
        %v536 = vld [vmem:[%s530 + $0x14] sm:$0xf]
        %v537 = vld [vmem:[%s530 + $0x18] sm:$0xf]
        %v538 = vld [vmem:[%s530 + $0x1c] sm:$0xf]
        %v539 = vld [vmem:[%s530 + $0x20] sm:$0xf]
        %v540 = vld [vmem:[%s530 + $0x24] sm:$0xf]
        %v541 = vld [vmem:[%s530 + $0x28] sm:$0xf]
        %v542 = vld [vmem:[%s530 + $0x2c] sm:$0xf]
        %v543 = vld [vmem:[%s530 + $0x30] sm:$0xf]
        %v544 = vld [vmem:[%s530 + $0x34] sm:$0xf]
        %v545 = vld [vmem:[%s530 + $0x38] sm:$0xf]
        %v546 = vld [vmem:[%s530 + $0x3c] sm:$0xf]
        %v549 = vunpack.c.l.b16 %v528
        %v550 = vunpack.c.l.b16 %v529
        %v551 = vpack.c.b16 %v550, %v549
        %v552 = vrot.slane %v551, 3
        %v570 = vunpack.c.l.b16 %v531
        %v571 = vunpack.c.l.b16 %v532
        %v572 = vunpack.c.l.b16 %v533
        %v573 = vunpack.c.l.b16 %v534
        %v574 = vunpack.c.l.b16 %v535
        %v575 = vunpack.c.l.b16 %v536
        %v576 = vunpack.c.l.b16 %v537
        %v577 = vunpack.c.l.b16 %v538
        %v578 = vunpack.c.l.b16 %v539
        %v579 = vunpack.c.l.b16 %v540
        %v580 = vunpack.c.l.b16 %v541
        %v581 = vunpack.c.l.b16 %v542
        %v582 = vunpack.c.l.b16 %v543
        %v583 = vunpack.c.l.b16 %v544
        %v584 = vunpack.c.l.b16 %v545
        %v585 = vunpack.c.l.b16 %v546
        %v586 = vpack.c.b16 %v571, %v570
        %v587 = vpack.c.b16 %v573, %v572
        %v588 = vpack.c.b16 %v575, %v574
        %v589 = vpack.c.b16 %v577, %v576
        %v590 = vpack.c.b16 %v579, %v578
        %v591 = vpack.c.b16 %v581, %v580
        %v592 = vpack.c.b16 %v583, %v582
        %v593 = vpack.c.b16 %v585, %v584
        %602 = vmatprep.subr.bf16.mxu0 0
        %603 = vmatpush1.bf16.msra.mxu0 %v593
        %604 = vmatprep.subr.bf16.mxu0 0
        %605 = vmatpush1.bf16.msra.mxu0 %v592
        %606 = vmatprep.subr.bf16.mxu0 0
        %607 = vmatpush1.bf16.msra.mxu0 %v591
        %608 = vmatprep.subr.bf16.mxu0 0
        %609 = vmatpush1.bf16.msra.mxu0 %v590
        %610 = vmatprep.subr.bf16.mxu0 0
        %611 = vmatpush1.bf16.msra.mxu0 %v589
        %612 = vmatprep.subr.bf16.mxu0 0
        %613 = vmatpush1.bf16.msra.mxu0 %v588
        %614 = vmatprep.subr.bf16.mxu0 0
        %615 = vmatpush1.bf16.msra.mxu0 %v587
        %616 = vmatprep.subr.bf16.mxu0 0
        %617 = vmatpush1.bf16.msra.mxu0 %v586
        %618 = vmatprep.subr.bf16.mxu0 0
        %619 = vmatpush2.bf16.msra.mxu0 0
        %620 = vmatprep.subr.bf16.mxu0 0
        %621 = vmatpush2.bf16.msra.mxu0 0
        %622 = vmatprep.subr.bf16.mxu0 0
        %623 = vmatpush2.bf16.msra.mxu0 0
        %624 = vmatprep.subr.bf16.mxu0 0
        %625 = vmatpush2.bf16.msra.mxu0 0
        %626 = vmatprep.subr.bf16.mxu0 0
        %627 = vmatpush2.bf16.msra.mxu0 0
        %628 = vmatprep.subr.bf16.mxu0 0
        %629 = vmatpush2.bf16.msra.mxu0 0
        %630 = vmatprep.subr.bf16.mxu0 0
        %631 = vmatpush2.bf16.msra.mxu0 0
        %632 = vmatprep.subr.bf16.mxu0 0
        %633 = vmatpush2.bf16.msra.mxu0 0
        %634 = vmatprep.mubr.bf16.mxu0 0
        %635 = vmatmul.mubr.bf16.gmra.mxu0 %v552
        %v636 = vpop.f32.mrf.mxu0
        %v637 = vadd.f32 0.0, %v636
        %v638 = vpop.f32.mrf.mxu0
        %v639 = vpop.f32.mrf.mxu0
        %v640 = vpop.f32.mrf.mxu0
        %641 = vdwg.mxu0
        %v644 = vunpack.c.l.b16 %v510
        %v645 = vunpack.c.l.b16 %v511
        %v646 = vpack.c.b16 %v645, %v644
        %v647 = vrot.slane %v646, 2
        %v665 = vunpack.c.l.b16 %v512
        %v666 = vunpack.c.l.b16 %v513
        %v667 = vunpack.c.l.b16 %v514
        %v668 = vunpack.c.l.b16 %v515
        %v669 = vunpack.c.l.b16 %v516
        %v670 = vunpack.c.l.b16 %v517
        %v671 = vunpack.c.l.b16 %v518
        %v672 = vunpack.c.l.b16 %v519
        %v673 = vunpack.c.l.b16 %v520
        %v674 = vunpack.c.l.b16 %v521
        %v675 = vunpack.c.l.b16 %v522
        %v676 = vunpack.c.l.b16 %v523
        %v677 = vunpack.c.l.b16 %v524
        %v678 = vunpack.c.l.b16 %v525
        %v679 = vunpack.c.l.b16 %v526
        %v680 = vunpack.c.l.b16 %v527
        %v681 = vpack.c.b16 %v666, %v665
        %v682 = vpack.c.b16 %v668, %v667
        %v683 = vpack.c.b16 %v670, %v669
        %v684 = vpack.c.b16 %v672, %v671
        %v685 = vpack.c.b16 %v674, %v673
        %v686 = vpack.c.b16 %v676, %v675
        %v687 = vpack.c.b16 %v678, %v677
        %v688 = vpack.c.b16 %v680, %v679
        %697 = vmatprep.subr.bf16.mxu0 0
        %698 = vmatpush1.bf16.msra.mxu0 %v688
        %699 = vmatprep.subr.bf16.mxu0 0
        %700 = vmatpush1.bf16.msra.mxu0 %v687
        %701 = vmatprep.subr.bf16.mxu0 0
        %702 = vmatpush1.bf16.msra.mxu0 %v686
        %703 = vmatprep.subr.bf16.mxu0 0
        %704 = vmatpush1.bf16.msra.mxu0 %v685
        %705 = vmatprep.subr.bf16.mxu0 0
        %706 = vmatpush1.bf16.msra.mxu0 %v684
        %707 = vmatprep.subr.bf16.mxu0 0
        %708 = vmatpush1.bf16.msra.mxu0 %v683
        %709 = vmatprep.subr.bf16.mxu0 0
        %710 = vmatpush1.bf16.msra.mxu0 %v682
        %711 = vmatprep.subr.bf16.mxu0 0
        %712 = vmatpush1.bf16.msra.mxu0 %v681
        %713 = vmatprep.subr.bf16.mxu0 0
        %714 = vmatpush2.bf16.msra.mxu0 0
        %715 = vmatprep.subr.bf16.mxu0 0
        %716 = vmatpush2.bf16.msra.mxu0 0
        %717 = vmatprep.subr.bf16.mxu0 0
        %718 = vmatpush2.bf16.msra.mxu0 0
        %719 = vmatprep.subr.bf16.mxu0 0
        %720 = vmatpush2.bf16.msra.mxu0 0
        %721 = vmatprep.subr.bf16.mxu0 0
        %722 = vmatpush2.bf16.msra.mxu0 0
        %723 = vmatprep.subr.bf16.mxu0 0
        %724 = vmatpush2.bf16.msra.mxu0 0
        %725 = vmatprep.subr.bf16.mxu0 0
        %726 = vmatpush2.bf16.msra.mxu0 0
        %727 = vmatprep.subr.bf16.mxu0 0
        %728 = vmatpush2.bf16.msra.mxu0 0
        %729 = vmatprep.mubr.bf16.mxu0 0
        %730 = vmatmul.mubr.bf16.gmra.mxu0 %v647
        %v731 = vpop.f32.mrf.mxu0
        %v732 = vadd.f32 %v637, %v731
        %v733 = vpop.f32.mrf.mxu0
        %v734 = vpop.f32.mrf.mxu0
        %v735 = vpop.f32.mrf.mxu0
        %736 = vdwg.mxu0
        %v737 = vld [vmem:[#allocation3 + $0x4] sm:$0xf]
        %s738 = scalar_lea.vmem [#allocation4], 128
        %v739 = vld [vmem:[%s738] sm:$0xf]
        %v740 = vld [vmem:[%s738 + $0x4] sm:$0xf]
        %v741 = vld [vmem:[%s738 + $0x8] sm:$0xf]
        %v742 = vld [vmem:[%s738 + $0xc] sm:$0xf]
        %v743 = vld [vmem:[%s738 + $0x10] sm:$0xf]
        %v744 = vld [vmem:[%s738 + $0x14] sm:$0xf]
        %v745 = vld [vmem:[%s738 + $0x18] sm:$0xf]
        %v746 = vld [vmem:[%s738 + $0x1c] sm:$0xf]
        %v747 = vld [vmem:[%s738 + $0x20] sm:$0xf]
        %v748 = vld [vmem:[%s738 + $0x24] sm:$0xf]
        %v749 = vld [vmem:[%s738 + $0x28] sm:$0xf]
        %v750 = vld [vmem:[%s738 + $0x2c] sm:$0xf]
        %v751 = vld [vmem:[%s738 + $0x30] sm:$0xf]
        %v752 = vld [vmem:[%s738 + $0x34] sm:$0xf]
        %v753 = vld [vmem:[%s738 + $0x38] sm:$0xf]
        %v754 = vld [vmem:[%s738 + $0x3c] sm:$0xf]
        %v771 = vunpack.c.l.b16 %v739
        %v772 = vunpack.c.l.b16 %v740
        %v773 = vunpack.c.l.b16 %v741
        %v774 = vunpack.c.l.b16 %v742
        %v775 = vunpack.c.l.b16 %v743
        %v776 = vunpack.c.l.b16 %v744
        %v777 = vunpack.c.l.b16 %v745
        %v778 = vunpack.c.l.b16 %v746
        %v779 = vunpack.c.l.b16 %v747
        %v780 = vunpack.c.l.b16 %v748
        %v781 = vunpack.c.l.b16 %v749
        %v782 = vunpack.c.l.b16 %v750
        %v783 = vunpack.c.l.b16 %v751
        %v784 = vunpack.c.l.b16 %v752
        %v785 = vunpack.c.l.b16 %v753
        %v786 = vunpack.c.l.b16 %v754
        %v787 = vpack.c.b16 %v772, %v771
        %v788 = vpack.c.b16 %v774, %v773
        %v789 = vpack.c.b16 %v776, %v775
        %v790 = vpack.c.b16 %v778, %v777
        %v791 = vpack.c.b16 %v780, %v779
        %v792 = vpack.c.b16 %v782, %v781
        %v793 = vpack.c.b16 %v784, %v783
        %v794 = vpack.c.b16 %v786, %v785
        %803 = vmatprep.subr.bf16.mxu0 0
        %804 = vmatpush1.bf16.msra.mxu0 %v794
        %805 = vmatprep.subr.bf16.mxu0 0
        %806 = vmatpush1.bf16.msra.mxu0 %v793
        %807 = vmatprep.subr.bf16.mxu0 0
        %808 = vmatpush1.bf16.msra.mxu0 %v792
        %809 = vmatprep.subr.bf16.mxu0 0
        %810 = vmatpush1.bf16.msra.mxu0 %v791
        %811 = vmatprep.subr.bf16.mxu0 0
        %812 = vmatpush1.bf16.msra.mxu0 %v790
        %813 = vmatprep.subr.bf16.mxu0 0
        %814 = vmatpush1.bf16.msra.mxu0 %v789
        %815 = vmatprep.subr.bf16.mxu0 0
        %816 = vmatpush1.bf16.msra.mxu0 %v788
        %817 = vmatprep.subr.bf16.mxu0 0
        %818 = vmatpush1.bf16.msra.mxu0 %v787
        %819 = vmatprep.subr.bf16.mxu0 0
        %820 = vmatpush2.bf16.msra.mxu0 0
        %821 = vmatprep.subr.bf16.mxu0 0
        %822 = vmatpush2.bf16.msra.mxu0 0
        %823 = vmatprep.subr.bf16.mxu0 0
        %824 = vmatpush2.bf16.msra.mxu0 0
        %825 = vmatprep.subr.bf16.mxu0 0
        %826 = vmatpush2.bf16.msra.mxu0 0
        %827 = vmatprep.subr.bf16.mxu0 0
        %828 = vmatpush2.bf16.msra.mxu0 0
        %829 = vmatprep.subr.bf16.mxu0 0
        %830 = vmatpush2.bf16.msra.mxu0 0
        %831 = vmatprep.subr.bf16.mxu0 0
        %832 = vmatpush2.bf16.msra.mxu0 0
        %833 = vmatprep.subr.bf16.mxu0 0
        %834 = vmatpush2.bf16.msra.mxu0 0
        %835 = vmatprep.mubr.bf16.mxu0 0
        %836 = vmatmul.mubr.bf16.gmra.mxu0 %v737
        %v837 = vpop.f32.mrf.mxu0
        %v838 = vadd.f32 0.0, %v837
        %v839 = vpop.f32.mrf.mxu0
        %v840 = vpop.f32.mrf.mxu0
        %v841 = vpop.f32.mrf.mxu0
        %842 = vdwg.mxu0
        %v843 = vadd.f32 %v732, %v838
        %v844 = vld [vmem:[%s4] sm:$0x1]
        %v846 = vlaneseq
        %v847 = vshrl.u32 %v846, 7
        %v848 = vsub.s32 0, %v847
        %v849 = vrot.slane %v844, %v848
        %v851 = vadd.f32 %v843, %v849
        %v852 = vmul.f32 %v851, 0.5
        %v853 = vmul.f32 %v851, 0.044715
        %v854 = vmul.f32 %v853, %v851
        %v855 = vmul.f32 %v854, %v851
        %v856 = vadd.f32 %v851, %v855
        %v857 = vmul.f32 %v856, 0.7978846
        %v858 = vtanh.pop %v857
        %v859 = vadd.f32 %v858, 1.0
        %v860 = vmul.f32 %v852, %v859
        %v861 = vld [vmem:[#allocation2 + $0x4] sm:$0xf]
        %v862 = vld [vmem:[%s5] sm:$0xf]
        %v863 = vld [vmem:[%s6] sm:$0x1]
        %v865 = vlaneseq
        %v866 = vshrl.u32 %v865, 7
        %v867 = vsub.s32 0, %v866
        %v868 = vrot.slane %v863, %v867
        %v871 = vsel %vm341, %v861, 0
        %v874 = vsel %vm345, %v862, 0
        %876 = vmatprep.subr.bf16.mxu0 0
        %877 = vmatpush1.bf16.msra.mxu0 0
        %878 = vmatprep.subr.bf16.mxu0 0
        %879 = vmatpush1.bf16.msra.mxu0 0
        %880 = vmatprep.subr.bf16.mxu0 0
        %881 = vmatpush1.bf16.msra.mxu0 0
        %882 = vmatprep.subr.bf16.mxu0 0
        %883 = vmatpush1.bf16.msra.mxu0 0
        %884 = vmatprep.subr.bf16.mxu0 0
        %885 = vmatpush1.bf16.msra.mxu0 0
        %886 = vmatprep.subr.bf16.mxu0 0
        %887 = vmatpush1.bf16.msra.mxu0 0
        %888 = vmatprep.subr.bf16.mxu0 0
        %889 = vmatpush1.bf16.msra.mxu0 0
        %890 = vmatprep.subr.bf16.mxu0 0
        %891 = vmatpush1.bf16.msra.mxu0 %v874
        %892 = vmatprep.subr.bf16.mxu0 0
        %893 = vmatpush2.bf16.msra.mxu0 0
        %894 = vmatprep.subr.bf16.mxu0 0
        %895 = vmatpush2.bf16.msra.mxu0 0
        %896 = vmatprep.subr.bf16.mxu0 0
        %897 = vmatpush2.bf16.msra.mxu0 0
        %898 = vmatprep.subr.bf16.mxu0 0
        %899 = vmatpush2.bf16.msra.mxu0 0
        %900 = vmatprep.subr.bf16.mxu0 0
        %901 = vmatpush2.bf16.msra.mxu0 0
        %902 = vmatprep.subr.bf16.mxu0 0
        %903 = vmatpush2.bf16.msra.mxu0 0
        %904 = vmatprep.subr.bf16.mxu0 0
        %905 = vmatpush2.bf16.msra.mxu0 0
        %906 = vmatprep.subr.bf16.mxu0 0
        %907 = vmatpush2.bf16.msra.mxu0 0
        %908 = vmatprep.mubr.bf16.mxu0 0
        %909 = vmatmul.mubr.bf16.gmra.mxu0 %v871
        %v910 = vpop.f32.mrf.mxu0
        %v911 = vadd.f32 %v868, %v910
        %v912 = vpop.f32.mrf.mxu0
        %v913 = vpop.f32.mrf.mxu0
        %v914 = vpop.f32.mrf.mxu0
        %915 = vdwg.mxu0
        %v916 = vadd.f32 %v860, %v911
        %917 = vst [vmem:[%s308] sm:$0xff] %v916
        %v918 = vld [vmem:[#allocation2 + $0x4] sm:$0xc]
        %vm919 = vcmask 60418
        %920 = vst.msk [vmem:[#allocation2] sm:$0xc] %vm919, %v918
        %v921 = vld [vmem:[#allocation3 + $0x4] sm:$0xc]
        %922 = vst [vmem:[#allocation3] sm:$0xc] %v921
        %s923 = sand.u32 %s198, 1
        %s924 = scalar_lea.sflag [#allocation6], %s923
        %s925 = sand.u32 %s198, 1
        %s926 = smul.addr %s925, 8
        %s927 = scalar_lea.vmem [#allocation7], %s926
        // Predicated region
        $region57: #{tpu_custom_call.1} parent=47 // pred_check
          %p928 = pneg %p208
        $region58: #{tpu_custom_call.1} parent=47 // pred_check_branch
          %930 = sbr.rel (%p928) target = $region60
        $region59: #{tpu_custom_call.1} parent=47 // pred_region
          %s932 = ssub.s32 128, 128
          %933 = vsyncadd %s924, %s932
          %s934 = smul.addr %s26, 2
          %s935 = sadd.s32 %s27, %s934
          %s936 = smul.addr %s935, 128
          %s937 = scalar_lea.hbm %s7, %s936
          %s939 = sshll.u32 %s927, 4
          %s940 = int_to_ptr.vmem [resolvable:$true] %s939
          %942 = dma.vmem_to_hbm [thread:$0]  %s940, 128, %s937, %s924
        $region60: #{tpu_custom_call.1} parent=47 // pred_fallthru
          _
      $region48: #{tpu_custom_call.1} parent=5 // pred_fallthru
        _
      %p943 = scmp.le.s32.totalorder 2, %s17
      // Predicated region
      $region61: #{tpu_custom_call.1} parent=5 // pred_check
        %p944 = pneg %p943
      $region62: #{tpu_custom_call.1} parent=5 // pred_check_branch
        %946 = sbr.rel (%p944) target = $region64
      $region63: #{tpu_custom_call.1} parent=5 // pred_region
        %s947 = ssub.s32 %s17, 2
        // Predicated region
        $region65: #{tpu_custom_call.1} parent=63 // pred_check
          %p948 = pneg %p214
        $region66: #{tpu_custom_call.1} parent=63 // pred_check_branch
          %950 = sbr.rel (%p948) target = $region68
        $region67: #{tpu_custom_call.1} parent=63 // pred_region
          %s951 = sand.u32 %s199, 1
          %s952 = scalar_lea.sflag [#allocation6], %s951
          %s953 = sand.u32 %s199, 1
          %s954 = smul.addr %s953, 8
          %s955 = scalar_lea.vmem [#allocation7], %s954
          %956 = dma.done %s952, 128
        $region68: #{tpu_custom_call.1} parent=63 // pred_fallthru
          _
      $region64: #{tpu_custom_call.1} parent=5 // pred_fallthru
        _
    $region6: #{tpu_custom_call.1} parent=1 // loop_footer
      %s21 = sadd.s32 1, %s17
    $region7: #{tpu_custom_call.1} parent=1 // loop_footer_branch
      %16 = sbr.rel target = $region3
    $region8: #{tpu_custom_call.1} parent=1 // loop_exit
      _
    %957 = vsyncpa [#allocation5], 1
    %s958 = scalar_lea.sflag [#allocation5], 1
    %959 = vsyncpa %s958, 1
    %960 = vsyncpa [#allocation6], 1
    %s961 = scalar_lea.sflag [#allocation6], 1
    %962 = vsyncpa %s961, 1

</llo_original>
